<compile_context>
chip_gen: v5e
topology: v5e:2x2
jax: 0.10.0
libtpu: 0.0.40
codegen_flags: <defaults>
</compile_context>

<pallas_src>
import functools

import jax
import jax.numpy as jnp
from jax.experimental import pallas as pl
from jax.experimental.pallas import tpu as pltpu


def _round_up(x, m):
    return ((x + m - 1) // m) * m


def _fused_edge_kernel(x1_ref, w1t_ref, b1_ref, x2t_ref, w2_ref, b2_ref,
                       out_ref, *, bf16_matmul):
    # combine1 tile [tm, D] = x1 @ W1.T + b1
    c1 = jnp.dot(x1_ref[...], w1t_ref[...],
                 preferred_element_type=jnp.float32) + b1_ref[...]
    # combine2.T tile [D, tn] = W2 @ x2.T + b2[:, None]   (lane-dense along tn)
    c2t = jnp.dot(w2_ref[...], x2t_ref[...],
                  preferred_element_type=jnp.float32) + b2_ref[...]
    if bf16_matmul:
        c1 = c1.astype(jnp.bfloat16)
        c2t = c2t.astype(jnp.bfloat16)
    # Plain [tm, D] @ [D, tn] MXU matmul, no in-kernel transpose.
    s = jnp.dot(c1, c2t, preferred_element_type=jnp.float32)
    out_ref[...] = jax.nn.sigmoid(s).astype(out_ref.dtype)  # exp -> EUP slot


def edge_predictor(node_embed1, node_embed2, w1, b1, w2, b2,
                   *, tm=256, tn=2048, out_dtype=jnp.bfloat16,
                   bf16_matmul=None):
    n1, d = node_embed1.shape
    n2, d2 = node_embed2.shape
    assert d == d2 and w1.shape == (d, d) and w2.shape == (d, d)

    if bf16_matmul is None:
        bf16_matmul = (out_dtype == jnp.bfloat16)

    # Align requested tiles to sublane/lane granularity, clamp to problem size.
    tm = max(8, (tm // 8) * 8)
    tn = max(128, (tn // 128) * 128)
    tm_eff = min(tm, _round_up(n1, 8))
    tn_eff = min(tn, _round_up(n2, 128))

    n1_pad = _round_up(n1, tm_eff)
    n2_pad = _round_up(n2, tn_eff)

    x1 = node_embed1
    if n1_pad != n1:
        x1 = jnp.pad(x1, ((0, n1_pad - n1), (0, 0)))
    x2t = node_embed2.T                       # one-time XLA transpose, [D, N2]
    if n2_pad != n2:
        x2t = jnp.pad(x2t, ((0, 0), (0, n2_pad - n2)))

    w1t = w1.T                                # [in, out] so MXU is fed directly
    b1r = b1.reshape(1, d)                    # row broadcast for c1
    b2c = b2.reshape(d, 1)                    # column broadcast for c2.T

    kernel = functools.partial(_fused_edge_kernel, bf16_matmul=bf16_matmul)

    adj = pl.pallas_call(
        kernel,
        out_shape=jax.ShapeDtypeStruct((n1_pad, n2_pad), out_dtype),
        grid=(n1_pad // tm_eff, n2_pad // tn_eff),
        in_specs=[
            pl.BlockSpec((tm_eff, d), lambda i, j: (i, 0)),   # x1 row tile
            pl.BlockSpec((d, d), lambda i, j: (0, 0)),        # W1.T (resident)
            pl.BlockSpec((1, d), lambda i, j: (0, 0)),        # b1 row
            pl.BlockSpec((d, tn_eff), lambda i, j: (0, j)),   # x2.T col tile
            pl.BlockSpec((d, d), lambda i, j: (0, 0)),        # W2 (resident)
            pl.BlockSpec((d, 1), lambda i, j: (0, 0)),        # b2 column
        ],
        out_specs=pl.BlockSpec((tm_eff, tn_eff), lambda i, j: (i, j)),
        compiler_params=pltpu.CompilerParams(
            dimension_semantics=("parallel", "parallel")),
    )(x1, w1t, b1r, x2t, w2, b2c)

    # Padded rows/cols pick up bias-only values through sigmoid (!= 0); this
    # slice must stay if the padding logic is ever refactored.
    return adj[:n1, :n2]


def edge_predictor_ref(node_embed1, node_embed2, w1, b1, w2, b2):
    c1 = node_embed1 @ w1.T + b1
    c2 = node_embed2 @ w2.T + b2
    return jax.nn.sigmoid(c1 @ c2.T)


if __name__ == "__main__":
    nembed = 32          # hidden size
    n_nodes1 = 40
    n_nodes2 = 200

    key = jax.random.PRNGKey(0)
    k_x1, k_x2, k_w1, k_b1, k_w2, k_b2 = jax.random.split(key, 6)

    node_embed1 = jax.random.normal(k_x1, (n_nodes1, nembed), dtype=jnp.float32)
    node_embed2 = jax.random.normal(k_x2, (n_nodes2, nembed), dtype=jnp.float32)

    # Parameters: weights ~ N(0, 0.05) (per reset_parameters),
    # biases ~ U(-1/sqrt(nembed), 1/sqrt(nembed)) (nn.Linear default).
    w1 = 0.05 * jax.random.normal(k_w1, (nembed, nembed), dtype=jnp.float32)
    w2 = 0.05 * jax.random.normal(k_w2, (nembed, nembed), dtype=jnp.float32)
    bound = 1.0 / float(jnp.sqrt(nembed))
    b1 = jax.random.uniform(k_b1, (nembed,), minval=-bound, maxval=bound,
                            dtype=jnp.float32)
    b2 = jax.random.uniform(k_b2, (nembed,), minval=-bound, maxval=bound,
                            dtype=jnp.float32)

    ref = edge_predictor_ref(node_embed1, node_embed2, w1, b1, w2, b2)

    # 1) Default fast path: bf16 output + bf16 MXU operands (writeback-bound
    #    regime); single output tile at this size.
    adj_bf16 = edge_predictor(node_embed1, node_embed2, w1, b1, w2, b2)
    adj_bf16 = jax.block_until_ready(adj_bf16)
    assert adj_bf16.shape == (n_nodes1, n_nodes2)
    assert adj_bf16.dtype == jnp.bfloat16
    assert jnp.allclose(adj_bf16.astype(jnp.float32), ref, atol=3e-2, rtol=3e-2)

    # 2) f32 path with small tiles to exercise the multi-tile grid + padding.
    adj_f32 = edge_predictor(node_embed1, node_embed2, w1, b1, w2, b2,
                             tm=16, tn=128, out_dtype=jnp.float32)
    adj_f32 = jax.block_until_ready(adj_f32)
    assert adj_f32.shape == (n_nodes1, n_nodes2)
    assert adj_f32.dtype == jnp.float32
    assert jnp.allclose(adj_f32, ref, atol=1e-4, rtol=1e-4)

    print("KERNEL_OK")
</pallas_src>

<mosaic_0001>
module attributes {stable_mosaic.version = 11 : i64} {
  func.func @_fused_edge_kernel(%arg0: i32, %arg1: i32, %arg2: memref<40x32xf32, #tpu.memory_space<vmem>>, %arg3: memref<32x32xf32, #tpu.memory_space<vmem>>, %arg4: memref<1x32xf32, #tpu.memory_space<vmem>>, %arg5: memref<32x256xf32, #tpu.memory_space<vmem>>, %arg6: memref<32x32xf32, #tpu.memory_space<vmem>>, %arg7: memref<32x1xf32, #tpu.memory_space<vmem>>, %arg8: memref<40x256xbf16, #tpu.memory_space<vmem>>) attributes {dimension_semantics = [#tpu.dimension_semantics<parallel>, #tpu.dimension_semantics<parallel>], iteration_bounds = array<i64: 1, 1>, scalar_prefetch = 0 : i64, scratch_operands = 0 : i64, tpu.core_type = #tpu.core_type<tc>, window_params = [{transform_indices = @transform_0, window_bounds = array<i64: 40, 32>}, {pipeline_mode = #tpu.pipeline_mode<synchronous>, transform_indices = @transform_1, window_bounds = array<i64: 32, 32>}, {pipeline_mode = #tpu.pipeline_mode<synchronous>, transform_indices = @transform_2, window_bounds = array<i64: 1, 32>}, {transform_indices = @transform_3, window_bounds = array<i64: 32, 256>}, {pipeline_mode = #tpu.pipeline_mode<synchronous>, transform_indices = @transform_4, window_bounds = array<i64: 32, 32>}, {pipeline_mode = #tpu.pipeline_mode<synchronous>, transform_indices = @transform_5, window_bounds = array<i64: 32, 1>}, {transform_indices = @transform_6, window_bounds = array<i64: 40, 256>}]} {
    %c0 = arith.constant 0 : index
    %c0_0 = arith.constant 0 : index
    %0 = vector.load %arg2[%c0, %c0_0] : memref<40x32xf32, #tpu.memory_space<vmem>>, vector<40x32xf32>
    %c0_1 = arith.constant 0 : index
    %c0_2 = arith.constant 0 : index
    %1 = vector.load %arg3[%c0_1, %c0_2] : memref<32x32xf32, #tpu.memory_space<vmem>>, vector<32x32xf32>
    %cst = arith.constant dense<0.000000e+00> : vector<40x32xf32>
    %2 = tpu.matmul %0, %1, %cst {dimension_numbers = #tpu.dot_dimension_numbers<[1], [0], [0], [1], [0, 0, 1, 1], [], []>} : vector<40x32xf32>, vector<32x32xf32>, vector<40x32xf32> -> vector<40x32xf32>
    %c0_3 = arith.constant 0 : index
    %c0_4 = arith.constant 0 : index
    %3 = vector.load %arg4[%c0_3, %c0_4] : memref<1x32xf32, #tpu.memory_space<vmem>>, vector<1x32xf32>
    %4 = vector.broadcast %3 : vector<1x32xf32> to vector<40x32xf32>
    %5 = arith.addf %2, %4 : vector<40x32xf32>
    %c0_5 = arith.constant 0 : index
    %c0_6 = arith.constant 0 : index
    %6 = vector.load %arg6[%c0_5, %c0_6] : memref<32x32xf32, #tpu.memory_space<vmem>>, vector<32x32xf32>
    %c0_7 = arith.constant 0 : index
    %c0_8 = arith.constant 0 : index
    %7 = vector.load %arg5[%c0_7, %c0_8] : memref<32x256xf32, #tpu.memory_space<vmem>>, vector<32x256xf32>
    %cst_9 = arith.constant dense<0.000000e+00> : vector<32x256xf32>
    %8 = tpu.matmul %6, %7, %cst_9 {dimension_numbers = #tpu.dot_dimension_numbers<[1], [0], [0], [1], [0, 0, 1, 1], [], []>} : vector<32x32xf32>, vector<32x256xf32>, vector<32x256xf32> -> vector<32x256xf32>
    %c0_10 = arith.constant 0 : index
    %c0_11 = arith.constant 0 : index
    %9 = vector.load %arg7[%c0_10, %c0_11] : memref<32x1xf32, #tpu.memory_space<vmem>>, vector<32x1xf32>
    %10 = vector.broadcast %9 : vector<32x1xf32> to vector<32x256xf32>
    %11 = arith.addf %8, %10 : vector<32x256xf32>
    %12 = arith.truncf %5 : vector<40x32xf32> to vector<40x32xbf16>
    %13 = arith.truncf %11 : vector<32x256xf32> to vector<32x256xbf16>
    %cst_12 = arith.constant dense<0.000000e+00> : vector<40x256xf32>
    %14 = tpu.matmul %12, %13, %cst_12 {dimension_numbers = #tpu.dot_dimension_numbers<[1], [0], [0], [1], [0, 0, 1, 1], [], []>} : vector<40x32xbf16>, vector<32x256xbf16>, vector<40x256xf32> -> vector<40x256xf32>
    %15 = arith.negf %14 : vector<40x256xf32>
    %16 = math.exp %15 : vector<40x256xf32>
    %cst_13 = arith.constant 1.000000e+00 : f32
    %17 = vector.broadcast %cst_13 : f32 to vector<40x256xf32>
    %18 = arith.addf %17, %16 : vector<40x256xf32>
    %19 = arith.divf %17, %18 : vector<40x256xf32>
    %20 = arith.truncf %19 : vector<40x256xf32> to vector<40x256xbf16>
    %c0_14 = arith.constant 0 : index
    %c0_15 = arith.constant 0 : index
    %21 = vector.load %arg8[%c0_14, %c0_15] : memref<40x256xbf16, #tpu.memory_space<vmem>>, vector<40x256xbf16>
    tpu.vector_store %arg8[%c0_14, %c0_15], %20 {strides = array<i32>} : memref<40x256xbf16, #tpu.memory_space<vmem>>, vector<40x256xbf16>,
    return
  }
  func.func @transform_0(%arg0: i32, %arg1: i32) -> (i32, i32) {
    %c0_i32 = arith.constant 0 : i32
    %c0_i32_0 = arith.constant 0 : i32
    return %arg0, %c0_i32 : i32, i32
  }
  func.func @transform_1(%arg0: i32, %arg1: i32) -> (i32, i32) {
    %c0_i32 = arith.constant 0 : i32
    %c0_i32_0 = arith.constant 0 : i32
    %c0_i32_1 = arith.constant 0 : i32
    return %c0_i32, %c0_i32_0 : i32, i32
  }
  func.func @transform_2(%arg0: i32, %arg1: i32) -> (i32, i32) {
    %c0_i32 = arith.constant 0 : i32
    %c0_i32_0 = arith.constant 0 : i32
    %c0_i32_1 = arith.constant 0 : i32
    return %c0_i32, %c0_i32_0 : i32, i32
  }
  func.func @transform_3(%arg0: i32, %arg1: i32) -> (i32, i32) {
    %c0_i32 = arith.constant 0 : i32
    %c0_i32_0 = arith.constant 0 : i32
    return %c0_i32, %arg1 : i32, i32
  }
  func.func @transform_4(%arg0: i32, %arg1: i32) -> (i32, i32) {
    %c0_i32 = arith.constant 0 : i32
    %c0_i32_0 = arith.constant 0 : i32
    %c0_i32_1 = arith.constant 0 : i32
    return %c0_i32, %c0_i32_0 : i32, i32
  }
  func.func @transform_5(%arg0: i32, %arg1: i32) -> (i32, i32) {
    %c0_i32 = arith.constant 0 : i32
    %c0_i32_0 = arith.constant 0 : i32
    %c0_i32_1 = arith.constant 0 : i32
    return %c0_i32, %c0_i32_0 : i32, i32
  }
  func.func @transform_6(%arg0: i32, %arg1: i32) -> (i32, i32) {
    %c0_i32 = arith.constant 0 : i32
    return %arg0, %arg1 : i32, i32
  }
}

</mosaic_0001>

<llo_original>
// kernel: tpu_custom_call.1
$region0: #{tpu_custom_call.1}
  #allocation0 [shape = 'u32[]', space=smem, size = 0x4, offset = 0x4, fixed_abs, tag = 'smem constant byte address 0x4 - core index']
  #allocation1 [shape = 'u32[72,128]{1,0:T(1,128)}', space=vmem, size = 0x9000, scoped, tag = 'internal scratch']
  %s0 = inlined_call_operand.vmem [shape: f32[40,32], index: 0, kind: input, shape index: {}]
  %s1 = inlined_call_operand.hbm [shape: f32[32,32], index: 1, kind: input, shape index: {}]
  %s2 = inlined_call_operand.vmem [shape: f32[1,32], index: 2, kind: input, shape index: {}]
  %s3 = inlined_call_operand.vmem [shape: f32[32,256], index: 3, kind: input, shape index: {}]
  %s4 = inlined_call_operand.hbm [shape: f32[32,32], index: 4, kind: input, shape index: {}]
  %s5 = inlined_call_operand.vmem [shape: f32[32,1], index: 5, kind: input, shape index: {}]
  %s6 = inlined_call_operand.hbm [shape: bf16[40,256], index: 6, kind: output, shape index: {}]
  %s7 = sld [smem:[#allocation0]]
  $region42: #{tpu_custom_call.1} parent=0
    _
  %s9 = ssub.s32 1, %s7
  %s10 = scalar_select 0, %s9, %s7
  $region1: #{tpu_custom_call.1} parent=0
    #allocation2 [shape = 'u8[16384]{0}', space=vmem, size = 0x4000, scoped, tag = 'input window, operand 1, single buffered']
    #allocation3 [shape = 's32[1]{0}', space=sflag, size = 0x4, scoped, tag = 'scoped memory for tpu_custom_call.1']
    #allocation4 [shape = 's32[1]{0}', space=sflag, size = 0x4, scoped, tag = 'scoped memory for tpu_custom_call.1']
    #allocation5 [shape = 'u8[16384]{0}', space=vmem, size = 0x4000, scoped, tag = 'input window, operand 4, single buffered']
    #allocation6 [shape = 's32[1]{0}', space=sflag, size = 0x4, scoped, tag = 'scoped memory for tpu_custom_call.1']
    #allocation7 [shape = 'u8[20480]{0}', space=vmem, size = 0x5000, scoped, tag = 'output window, operand 0, single buffered']
    %11 = vsyncpa [#allocation3], 0
    %12 = vsyncpa [#allocation6], 0
    %13 = vsyncpa [#allocation4], 0
    // Predicated region
    $region2: #{tpu_custom_call.1} parent=1 // pred_check
      _
    $region3: #{tpu_custom_call.1} parent=1 // pred_check_branch
      %15 = sbr.rel (0) target = $region5
    $region4: #{tpu_custom_call.1} parent=1 // pred_region
      _
    $region5: #{tpu_custom_call.1} parent=1 // pred_fallthru
      _
    // Predicated region
    $region6: #{tpu_custom_call.1} parent=1 // pred_check
      _
    $region7: #{tpu_custom_call.1} parent=1 // pred_check_branch
      %17 = sbr.rel (0) target = $region9
    $region8: #{tpu_custom_call.1} parent=1 // pred_region
      %19 = vsyncadd [#allocation3], 0
      %s20 = sshll.u32 %s1, 4
      %s21 = int_to_ptr.hbm [resolvable:$true] %s20
      %s22 = sshll.u32 [#allocation2], 4
      %s23 = int_to_ptr.vmem [resolvable:$true] %s22
      %28 = dma.hbm_to_vmem [thread:$0]  %s21, 512, %s23, [#allocation3], 128, 128, 8
    $region9: #{tpu_custom_call.1} parent=1 // pred_fallthru
      _
    // Predicated region
    $region10: #{tpu_custom_call.1} parent=1 // pred_check
      _
    $region11: #{tpu_custom_call.1} parent=1 // pred_check_branch
      %30 = sbr.rel (0) target = $region13
    $region12: #{tpu_custom_call.1} parent=1 // pred_region
      _
    $region13: #{tpu_custom_call.1} parent=1 // pred_fallthru
      _
    // Predicated region
    $region14: #{tpu_custom_call.1} parent=1 // pred_check
      _
    $region15: #{tpu_custom_call.1} parent=1 // pred_check_branch
      %32 = sbr.rel (0) target = $region17
    $region16: #{tpu_custom_call.1} parent=1 // pred_region
      _
    $region17: #{tpu_custom_call.1} parent=1 // pred_fallthru
      _
    // Predicated region
    $region18: #{tpu_custom_call.1} parent=1 // pred_check
      _
    $region19: #{tpu_custom_call.1} parent=1 // pred_check_branch
      %34 = sbr.rel (0) target = $region21
    $region20: #{tpu_custom_call.1} parent=1 // pred_region
      %36 = vsyncadd [#allocation6], 0
      %s37 = sshll.u32 %s4, 4
      %s38 = int_to_ptr.hbm [resolvable:$true] %s37
      %s39 = sshll.u32 [#allocation5], 4
      %s40 = int_to_ptr.vmem [resolvable:$true] %s39
      %45 = dma.hbm_to_vmem [thread:$0]  %s38, 512, %s40, [#allocation6], 128, 128, 8
    $region21: #{tpu_custom_call.1} parent=1 // pred_fallthru
      _
    // Predicated region
    $region22: #{tpu_custom_call.1} parent=1 // pred_check
      _
    $region23: #{tpu_custom_call.1} parent=1 // pred_check_branch
      %47 = sbr.rel (0) target = $region25
    $region24: #{tpu_custom_call.1} parent=1 // pred_region
      _
    $region25: #{tpu_custom_call.1} parent=1 // pred_fallthru
      _
    // Predicated region
    $region26: #{tpu_custom_call.1} parent=1 // pred_check
      _
    $region27: #{tpu_custom_call.1} parent=1 // pred_check_branch
      %49 = sbr.rel (0) target = $region29
    $region28: #{tpu_custom_call.1} parent=1 // pred_region
      %51 = dma.done [#allocation3], 512
    $region29: #{tpu_custom_call.1} parent=1 // pred_fallthru
      _
    // Predicated region
    $region30: #{tpu_custom_call.1} parent=1 // pred_check
      _
    $region31: #{tpu_custom_call.1} parent=1 // pred_check_branch
      %53 = sbr.rel (0) target = $region33
    $region32: #{tpu_custom_call.1} parent=1 // pred_region
      %55 = dma.done [#allocation6], 512
    $region33: #{tpu_custom_call.1} parent=1 // pred_fallthru
      _
    %v57 = vld [vmem:[%s0] sm:$0xff]
    %v58 = vld [vmem:[%s0 + $0x8] sm:$0xff]
    %v59 = vld [vmem:[%s0 + $0x10] sm:$0xff]
    %v60 = vld [vmem:[%s0 + $0x18] sm:$0xff]
    %v61 = vld [vmem:[%s0 + $0x20] sm:$0xff]
    %v62 = vld [vmem:[#allocation2] sm:$0xff]
    %v63 = vld [vmem:[#allocation2 + $0x8] sm:$0xff]
    %v64 = vld [vmem:[#allocation2 + $0x10] sm:$0xff]
    %v65 = vld [vmem:[#allocation2 + $0x18] sm:$0xff]
    %v66 = vld [vmem:[%s2] sm:$0x1]
    %v68 = vperm.slane %v66, 0
    %vm70 = vcmask 261120
    %v72 = vsel %vm70, %v57, 0
    %v75 = vsel %vm70, %v58, 0
    %v78 = vsel %vm70, %v59, 0
    %v81 = vsel %vm70, %v60, 0
    %v84 = vsel %vm70, %v61, 0
    %86 = vmatpush.msra.mxu0 0.0
    %87 = vmatpush.msra.mxu0 0.0
    %88 = vmatpush.msra.mxu0 0.0
    %89 = vmatpush.msra.mxu0 0.0
    %90 = vmatpush.msra.mxu0 0.0
    %91 = vmatpush.msra.mxu0 0.0
    %92 = vmatpush.msra.mxu0 0.0
    %93 = vmatpush.msra.mxu0 0.0
    %94 = vmatpush.msra.mxu0 0.0
    %95 = vmatpush.msra.mxu0 0.0
    %96 = vmatpush.msra.mxu0 0.0
    %97 = vmatpush.msra.mxu0 0.0
    %98 = vmatpush.msra.mxu0 %v65
    %99 = vmatpush.msra.mxu0 %v64
    %100 = vmatpush.msra.mxu0 %v63
    %101 = vmatpush.msra.mxu0 %v62
    %102 = vmatmul.f32.gmra.mxu0 %v72
    %v103 = vpop.f32.mrf.mxu0
    %v104 = vadd.f32 %v68, %v103
    %105 = vmatmul.f32.gmra.mxu0 %v75
    %v106 = vpop.f32.mrf.mxu0
    %v107 = vadd.f32 %v68, %v106
    %108 = vmatmul.f32.gmra.mxu0 %v78
    %v109 = vpop.f32.mrf.mxu0
    %v110 = vadd.f32 %v68, %v109
    %111 = vmatmul.f32.gmra.mxu0 %v81
    %v112 = vpop.f32.mrf.mxu0
    %v113 = vadd.f32 %v68, %v112
    %114 = vmatmul.f32.gmra.mxu0 %v84
    %v115 = vpop.f32.mrf.mxu0
    %v116 = vadd.f32 %v68, %v115
    %117 = vdwg.mxu0
    %v118 = vld [vmem:[#allocation5] sm:$0xff]
    %v119 = vld [vmem:[#allocation5 + $0x8] sm:$0xff]
    %v120 = vld [vmem:[#allocation5 + $0x10] sm:$0xff]
    %v121 = vld [vmem:[#allocation5 + $0x18] sm:$0xff]
    %v122 = vld [vmem:[%s3] sm:$0xff]
    %v123 = vld [vmem:[%s3 + $0x8] sm:$0xff]
    %v124 = vld [vmem:[%s3 + $0x10] sm:$0xff]
    %v125 = vld [vmem:[%s3 + $0x18] sm:$0xff]
    %v126 = vld [vmem:[%s3 + $0x20] sm:$0xff]
    %v127 = vld [vmem:[%s3 + $0x28] sm:$0xff]
    %v128 = vld [vmem:[%s3 + $0x30] sm:$0xff]
    %v129 = vld [vmem:[%s3 + $0x38] sm:$0xff]
    %v130 = vld [vmem:[%s5] sm:$0xff]
    %v131 = vld [vmem:[%s5 + $0x8] sm:$0xff]
    %v132 = vld [vmem:[%s5 + $0x10] sm:$0xff]
    %v133 = vld [vmem:[%s5 + $0x18] sm:$0xff]
    %135 = vset.pattern.permute.xlu0 0
    %136 = vperm.xlu0 %135, %v130
    %v137 = vpop.permute.xlu0 %136
    %140 = vset.pattern.permute.xlu0 0
    %141 = vperm.xlu0 %140, %v131
    %v142 = vpop.permute.xlu0 %141
    %145 = vset.pattern.permute.xlu0 0
    %146 = vperm.xlu0 %145, %v132
    %v147 = vpop.permute.xlu0 %146
    %150 = vset.pattern.permute.xlu0 0
    %151 = vperm.xlu0 %150, %v133
    %v152 = vpop.permute.xlu0 %151
    %v155 = vsel %vm70, %v118, 0
    %v158 = vsel %vm70, %v119, 0
    %v161 = vsel %vm70, %v120, 0
    %v164 = vsel %vm70, %v121, 0
    %166 = vmatpush.msra.mxu0 0.0
    %167 = vmatpush.msra.mxu0 0.0
    %168 = vmatpush.msra.mxu0 0.0
    %169 = vmatpush.msra.mxu0 0.0
    %170 = vmatpush.msra.mxu0 0.0
    %171 = vmatpush.msra.mxu0 0.0
    %172 = vmatpush.msra.mxu0 0.0
    %173 = vmatpush.msra.mxu0 0.0
    %174 = vmatpush.msra.mxu0 0.0
    %175 = vmatpush.msra.mxu0 0.0
    %176 = vmatpush.msra.mxu0 0.0
    %177 = vmatpush.msra.mxu0 0.0
    %178 = vmatpush.msra.mxu0 %v128
    %179 = vmatpush.msra.mxu0 %v126
    %180 = vmatpush.msra.mxu0 %v124
    %181 = vmatpush.msra.mxu0 %v122
    %182 = vmatmul.f32.gmra.mxu0 %v155
    %v183 = vpop.f32.mrf.mxu0
    %v184 = vadd.f32 %v137, %v183
    %185 = vmatmul.f32.gmra.mxu0 %v158
    %v186 = vpop.f32.mrf.mxu0
    %v187 = vadd.f32 %v142, %v186
    %188 = vmatmul.f32.gmra.mxu0 %v161
    %v189 = vpop.f32.mrf.mxu0
    %v190 = vadd.f32 %v147, %v189
    %191 = vmatmul.f32.gmra.mxu0 %v164
    %v192 = vpop.f32.mrf.mxu0
    %v193 = vadd.f32 %v152, %v192
    %194 = vdwg.mxu0
    %195 = vmatpush.msra.mxu0 0.0
    %196 = vmatpush.msra.mxu0 0.0
    %197 = vmatpush.msra.mxu0 0.0
    %198 = vmatpush.msra.mxu0 0.0
    %199 = vmatpush.msra.mxu0 0.0
    %200 = vmatpush.msra.mxu0 0.0
    %201 = vmatpush.msra.mxu0 0.0
    %202 = vmatpush.msra.mxu0 0.0
    %203 = vmatpush.msra.mxu0 0.0
    %204 = vmatpush.msra.mxu0 0.0
    %205 = vmatpush.msra.mxu0 0.0
    %206 = vmatpush.msra.mxu0 0.0
    %207 = vmatpush.msra.mxu0 %v129
    %208 = vmatpush.msra.mxu0 %v127
    %209 = vmatpush.msra.mxu0 %v125
    %210 = vmatpush.msra.mxu0 %v123
    %211 = vmatmul.f32.gmra.mxu0 %v155
    %v212 = vpop.f32.mrf.mxu0
    %v213 = vadd.f32 %v137, %v212
    %214 = vmatmul.f32.gmra.mxu0 %v158
    %v215 = vpop.f32.mrf.mxu0
    %v216 = vadd.f32 %v142, %v215
    %217 = vmatmul.f32.gmra.mxu0 %v161
    %v218 = vpop.f32.mrf.mxu0
    %v219 = vadd.f32 %v147, %v218
    %220 = vmatmul.f32.gmra.mxu0 %v164
    %v221 = vpop.f32.mrf.mxu0
    %v222 = vadd.f32 %v152, %v221
    %223 = vdwg.mxu0
    %v224 = vpack.c.bf16 %v107, %v104
    %v225 = vpack.c.bf16 %v113, %v110
    %v226 = vpack.c.bf16 %v116, %v116
    %v227 = vpack.c.bf16 %v187, %v184
    %v228 = vpack.c.bf16 %v216, %v213
    %v229 = vpack.c.bf16 %v193, %v190
    %v230 = vpack.c.bf16 %v222, %v219
    %v232 = vsel %vm70, %v224, 0
    %v235 = vsel %vm70, %v225, 0
    %v238 = vsel %vm70, %v226, 0
    %240 = vmatpush.bf16.msra.mxu0 0
    %241 = vmatpush.bf16.msra.mxu0 0
    %242 = vmatpush.bf16.msra.mxu0 0
    %243 = vmatpush.bf16.msra.mxu0 0
    %244 = vmatpush.bf16.msra.mxu0 0
    %245 = vmatpush.bf16.msra.mxu0 0
    %246 = vmatpush.bf16.msra.mxu0 %v229
    %247 = vmatpush.bf16.msra.mxu0 %v227
    %248 = vmatmul.bf16.gmra.mxu0 %v232
    %v249 = vpop.f32.mrf.mxu0
    %v250 = vadd.f32 0.0, %v249
    %v251 = vpop.f32.mrf.mxu0
    %v252 = vadd.f32 0.0, %v251
    %253 = vmatmul.bf16.gmra.mxu0 %v235
    %v254 = vpop.f32.mrf.mxu0
    %v255 = vadd.f32 0.0, %v254
    %v256 = vpop.f32.mrf.mxu0
    %v257 = vadd.f32 0.0, %v256
    %258 = vmatmul.bf16.gmra.mxu0 %v238
    %v259 = vpop.f32.mrf.mxu0
    %v260 = vadd.f32 0.0, %v259
    %v261 = vpop.f32.mrf.mxu0
    %262 = vdwg.mxu0
    %263 = vmatpush.bf16.msra.mxu0 0
    %264 = vmatpush.bf16.msra.mxu0 0
    %265 = vmatpush.bf16.msra.mxu0 0
    %266 = vmatpush.bf16.msra.mxu0 0
    %267 = vmatpush.bf16.msra.mxu0 0
    %268 = vmatpush.bf16.msra.mxu0 0
    %269 = vmatpush.bf16.msra.mxu0 %v230
    %270 = vmatpush.bf16.msra.mxu0 %v228
    %271 = vmatmul.bf16.gmra.mxu0 %v232
    %v272 = vpop.f32.mrf.mxu0
    %v273 = vadd.f32 0.0, %v272
    %v274 = vpop.f32.mrf.mxu0
    %v275 = vadd.f32 0.0, %v274
    %276 = vmatmul.bf16.gmra.mxu0 %v235
    %v277 = vpop.f32.mrf.mxu0
    %v278 = vadd.f32 0.0, %v277
    %v279 = vpop.f32.mrf.mxu0
    %v280 = vadd.f32 0.0, %v279
    %281 = vmatmul.bf16.gmra.mxu0 %v238
    %v282 = vpop.f32.mrf.mxu0
    %v283 = vadd.f32 0.0, %v282
    %v284 = vpop.f32.mrf.mxu0
    %285 = vdwg.mxu0
    %v286 = vxor.u32 %v250, 2147483648
    %v287 = vxor.u32 %v273, 2147483648
    %v288 = vxor.u32 %v252, 2147483648
    %v289 = vxor.u32 %v275, 2147483648
    %v290 = vxor.u32 %v255, 2147483648
    %v291 = vxor.u32 %v278, 2147483648
    %v292 = vxor.u32 %v257, 2147483648
    %v293 = vxor.u32 %v280, 2147483648
    %v294 = vxor.u32 %v260, 2147483648
    %v295 = vxor.u32 %v283, 2147483648
    %v296 = vmul.f32 %v286, 1.442695
    %v297 = vpow.pop %v296
    %v298 = vmul.f32 %v287, 1.442695
    %v299 = vpow.pop %v298
    %v300 = vmul.f32 %v288, 1.442695
    %v301 = vpow.pop %v300
    %v302 = vmul.f32 %v289, 1.442695
    %v303 = vpow.pop %v302
    %v304 = vmul.f32 %v290, 1.442695
    %v305 = vpow.pop %v304
    %v306 = vmul.f32 %v291, 1.442695
    %v307 = vpow.pop %v306
    %v308 = vmul.f32 %v292, 1.442695
    %v309 = vpow.pop %v308
    %v310 = vmul.f32 %v293, 1.442695
    %v311 = vpow.pop %v310
    %v312 = vmul.f32 %v294, 1.442695
    %v313 = vpow.pop %v312
    %v314 = vmul.f32 %v295, 1.442695
    %v315 = vpow.pop %v314
    %v316 = vadd.f32 %v297, 1.0
    %v317 = vadd.f32 %v299, 1.0
    %v318 = vadd.f32 %v301, 1.0
    %v319 = vadd.f32 %v303, 1.0
    %v320 = vadd.f32 %v305, 1.0
    %v321 = vadd.f32 %v307, 1.0
    %v322 = vadd.f32 %v309, 1.0
    %v323 = vadd.f32 %v311, 1.0
    %v324 = vadd.f32 %v313, 1.0
    %v325 = vadd.f32 %v315, 1.0
    %v326 = vrcp.pop %v316
    %v327 = vmul.f32 %v316, %v326
    %v328 = vsub.f32 1.0, %v327
    %v329 = vmul.f32 %v326, %v328
    %v330 = vadd.f32 %v326, %v329
    %vm331 = vweird.f32 %v316
    %vm332 = vweird.f32 %v326
    %vm333 = vmor %vm331, %vm332
    %v334 = vsel %vm333, %v326, %v330
    %v335 = vand.u32 2147483647, %v316
    %vm336 = vcmp.eq.f32.partialorder %v335, 8.507059e+37
    %v337 = vand.u32 %v316, 2147483648
    %v338 = vor.u32 1.1754944e-38, %v337
    %v339 = vsel %vm336, %v338, %v334
    %v340 = vmul.f32 1.0, %v339
    %v341 = vrcp.pop %v317
    %v342 = vmul.f32 %v317, %v341
    %v343 = vsub.f32 1.0, %v342
    %v344 = vmul.f32 %v341, %v343
    %v345 = vadd.f32 %v341, %v344
    %vm346 = vweird.f32 %v317
    %vm347 = vweird.f32 %v341
    %vm348 = vmor %vm346, %vm347
    %v349 = vsel %vm348, %v341, %v345
    %v350 = vand.u32 2147483647, %v317
    %vm351 = vcmp.eq.f32.partialorder %v350, 8.507059e+37
    %v352 = vand.u32 %v317, 2147483648
    %v353 = vor.u32 1.1754944e-38, %v352
    %v354 = vsel %vm351, %v353, %v349
    %v355 = vmul.f32 1.0, %v354
    %v356 = vrcp.pop %v318
    %v357 = vmul.f32 %v318, %v356
    %v358 = vsub.f32 1.0, %v357
    %v359 = vmul.f32 %v356, %v358
    %v360 = vadd.f32 %v356, %v359
    %vm361 = vweird.f32 %v318
    %vm362 = vweird.f32 %v356
    %vm363 = vmor %vm361, %vm362
    %v364 = vsel %vm363, %v356, %v360
    %v365 = vand.u32 2147483647, %v318
    %vm366 = vcmp.eq.f32.partialorder %v365, 8.507059e+37
    %v367 = vand.u32 %v318, 2147483648
    %v368 = vor.u32 1.1754944e-38, %v367
    %v369 = vsel %vm366, %v368, %v364
    %v370 = vmul.f32 1.0, %v369
    %v371 = vrcp.pop %v319
    %v372 = vmul.f32 %v319, %v371
    %v373 = vsub.f32 1.0, %v372
    %v374 = vmul.f32 %v371, %v373
    %v375 = vadd.f32 %v371, %v374
    %vm376 = vweird.f32 %v319
    %vm377 = vweird.f32 %v371
    %vm378 = vmor %vm376, %vm377
    %v379 = vsel %vm378, %v371, %v375
    %v380 = vand.u32 2147483647, %v319
    %vm381 = vcmp.eq.f32.partialorder %v380, 8.507059e+37
    %v382 = vand.u32 %v319, 2147483648
    %v383 = vor.u32 1.1754944e-38, %v382
    %v384 = vsel %vm381, %v383, %v379
    %v385 = vmul.f32 1.0, %v384
    %v386 = vrcp.pop %v320
    %v387 = vmul.f32 %v320, %v386
    %v388 = vsub.f32 1.0, %v387
    %v389 = vmul.f32 %v386, %v388
    %v390 = vadd.f32 %v386, %v389
    %vm391 = vweird.f32 %v320
    %vm392 = vweird.f32 %v386
    %vm393 = vmor %vm391, %vm392
    %v394 = vsel %vm393, %v386, %v390
    %v395 = vand.u32 2147483647, %v320
    %vm396 = vcmp.eq.f32.partialorder %v395, 8.507059e+37
    %v397 = vand.u32 %v320, 2147483648
    %v398 = vor.u32 1.1754944e-38, %v397
    %v399 = vsel %vm396, %v398, %v394
    %v400 = vmul.f32 1.0, %v399
    %v401 = vrcp.pop %v321
    %v402 = vmul.f32 %v321, %v401
    %v403 = vsub.f32 1.0, %v402
    %v404 = vmul.f32 %v401, %v403
    %v405 = vadd.f32 %v401, %v404
    %vm406 = vweird.f32 %v321
    %vm407 = vweird.f32 %v401
    %vm408 = vmor %vm406, %vm407
    %v409 = vsel %vm408, %v401, %v405
    %v410 = vand.u32 2147483647, %v321
    %vm411 = vcmp.eq.f32.partialorder %v410, 8.507059e+37
    %v412 = vand.u32 %v321, 2147483648
    %v413 = vor.u32 1.1754944e-38, %v412
    %v414 = vsel %vm411, %v413, %v409
    %v415 = vmul.f32 1.0, %v414
    %v416 = vrcp.pop %v322
    %v417 = vmul.f32 %v322, %v416
    %v418 = vsub.f32 1.0, %v417
    %v419 = vmul.f32 %v416, %v418
    %v420 = vadd.f32 %v416, %v419
    %vm421 = vweird.f32 %v322
    %vm422 = vweird.f32 %v416
    %vm423 = vmor %vm421, %vm422
    %v424 = vsel %vm423, %v416, %v420
    %v425 = vand.u32 2147483647, %v322
    %vm426 = vcmp.eq.f32.partialorder %v425, 8.507059e+37
    %v427 = vand.u32 %v322, 2147483648
    %v428 = vor.u32 1.1754944e-38, %v427
    %v429 = vsel %vm426, %v428, %v424
    %v430 = vmul.f32 1.0, %v429
    %v431 = vrcp.pop %v323
    %v432 = vmul.f32 %v323, %v431
    %v433 = vsub.f32 1.0, %v432
    %v434 = vmul.f32 %v431, %v433
    %v435 = vadd.f32 %v431, %v434
    %vm436 = vweird.f32 %v323
    %vm437 = vweird.f32 %v431
    %vm438 = vmor %vm436, %vm437
    %v439 = vsel %vm438, %v431, %v435
    %v440 = vand.u32 2147483647, %v323
    %vm441 = vcmp.eq.f32.partialorder %v440, 8.507059e+37
    %v442 = vand.u32 %v323, 2147483648
    %v443 = vor.u32 1.1754944e-38, %v442
    %v444 = vsel %vm441, %v443, %v439
    %v445 = vmul.f32 1.0, %v444
    %v446 = vrcp.pop %v324
    %v447 = vmul.f32 %v324, %v446
    %v448 = vsub.f32 1.0, %v447
    %v449 = vmul.f32 %v446, %v448
    %v450 = vadd.f32 %v446, %v449
    %vm451 = vweird.f32 %v324
    %vm452 = vweird.f32 %v446
    %vm453 = vmor %vm451, %vm452
    %v454 = vsel %vm453, %v446, %v450
    %v455 = vand.u32 2147483647, %v324
    %vm456 = vcmp.eq.f32.partialorder %v455, 8.507059e+37
    %v457 = vand.u32 %v324, 2147483648
    %v458 = vor.u32 1.1754944e-38, %v457
    %v459 = vsel %vm456, %v458, %v454
    %v460 = vmul.f32 1.0, %v459
    %v461 = vrcp.pop %v325
    %v462 = vmul.f32 %v325, %v461
    %v463 = vsub.f32 1.0, %v462
    %v464 = vmul.f32 %v461, %v463
    %v465 = vadd.f32 %v461, %v464
    %vm466 = vweird.f32 %v325
    %vm467 = vweird.f32 %v461
    %vm468 = vmor %vm466, %vm467
    %v469 = vsel %vm468, %v461, %v465
    %v470 = vand.u32 2147483647, %v325
    %vm471 = vcmp.eq.f32.partialorder %v470, 8.507059e+37
    %v472 = vand.u32 %v325, 2147483648
    %v473 = vor.u32 1.1754944e-38, %v472
    %v474 = vsel %vm471, %v473, %v469
    %v475 = vmul.f32 1.0, %v474
    %v476 = vpack.c.bf16 %v355, %v340
    %v477 = vpack.c.bf16 %v385, %v370
    %v478 = vpack.c.bf16 %v415, %v400
    %v479 = vpack.c.bf16 %v445, %v430
    %v480 = vpack.c.bf16 %v475, %v460
    %481 = vst [vmem:[#allocation7] sm:$0xff] %v476
    %482 = vst [vmem:[#allocation7 + $0x8] sm:$0xff] %v477
    %483 = vst [vmem:[#allocation7 + $0x10] sm:$0xff] %v478
    %484 = vst [vmem:[#allocation7 + $0x18] sm:$0xff] %v479
    %485 = vst [vmem:[#allocation7 + $0x20] sm:$0xff] %v480
    // Predicated region
    $region34: #{tpu_custom_call.1} parent=1 // pred_check
      _
    $region35: #{tpu_custom_call.1} parent=1 // pred_check_branch
      %487 = sbr.rel (0) target = $region37
    $region36: #{tpu_custom_call.1} parent=1 // pred_region
      %489 = vsyncadd [#allocation4], 0
      %s490 = sshll.u32 [#allocation7], 4
      %s491 = int_to_ptr.vmem [resolvable:$true] %s490
      %s492 = sshll.u32 %s6, 4
      %s493 = int_to_ptr.hbm [resolvable:$true] %s492
      %498 = dma.vmem_to_hbm [thread:$0]  %s491, 640, %s493, [#allocation4], 128, 128, 8
    $region37: #{tpu_custom_call.1} parent=1 // pred_fallthru
      _
    // Predicated region
    $region38: #{tpu_custom_call.1} parent=1 // pred_check
      _
    $region39: #{tpu_custom_call.1} parent=1 // pred_check_branch
      %500 = sbr.rel (0) target = $region41
    $region40: #{tpu_custom_call.1} parent=1 // pred_region
      %502 = dma.done [#allocation4], 640
    $region41: #{tpu_custom_call.1} parent=1 // pred_fallthru
      _
    %503 = vsyncpa [#allocation3], 1
    %504 = vsyncpa [#allocation6], 1
    %505 = vsyncpa [#allocation4], 1

</llo_original>
